<compile_context>
chip_gen: v6e
topology: v6e:2x2x1
jax: 0.10.0
libtpu: 0.0.40
codegen_flags: <defaults>
</compile_context>

<pallas_src>
import numpy as np
import jax
import jax.numpy as jnp
from jax.experimental import pallas as pl
from jax.experimental.pallas import tpu as pltpu


def _round_up(x, m):
    return ((x + m - 1) // m) * m


def pic_conv_kernel(w_ref, p_ref, b_ref, o_ref):
    # w_ref: (Cout_p, K)      fused (pool-folded) conv weight, bf16, resident
    # p_ref: (K, TILE_M)      stride-2 im2col patch tile, bf16, lane-dense
    # b_ref: (Cout_p, 1)      per-channel bias, f32, resident
    # o_ref: (Cout_p, TILE_M) sigmoid(conv+pool+bias), f32, lane-dense
    acc = jnp.dot(w_ref[...], p_ref[...], preferred_element_type=jnp.float32)
    o_ref[...] = jax.nn.sigmoid(acc + b_ref[...]).astype(o_ref.dtype)


def pic_conv_layer(x_nchw, weight, bias, *, stride=1, padding=1, tile_m=512,
                   patch_dtype=jnp.bfloat16):
    """Forward pass of PICConvLayer. x_nchw: (N, Cin, H, W); weight: (Cout, Cin, KH, KW);
    bias: (1, Cout, 1, 1). Returns (N, Cout, H_out//2, W_out//2) in NCHW."""
    N, Cin, H, W = x_nchw.shape
    Cout, _, KH, KW = weight.shape
    assert stride == 1, "pool fusion below is derived for conv stride=1 (module default)"
    tile_m = max(128, (tile_m // 128) * 128)   # lane-dense tiles only

    # ---- fold AvgPool2d(2,2) into the conv: effective (KH+1, KW+1), stride-2 kernel ----
    w_eff = jnp.zeros((Cout, Cin, KH + 1, KW + 1), jnp.float32)
    for a in range(2):
        for b in range(2):
            w_eff = w_eff.at[:, :, a:a + KH, b:b + KW].add(0.25 * weight.astype(jnp.float32))
    KEh, KEw = KH + 1, KW + 1

    # ---- glue: pad NCHW input, build patches directly in (K, M) order (no transposes) --
    xp = jnp.pad(x_nchw, ((0, 0), (0, 0), (padding, padding), (padding, padding)))
    xp = xp.astype(patch_dtype)                 # cast once; halves im2col HBM write
    Hpad, Wpad = xp.shape[2], xp.shape[3]
    Hpo = (Hpad - KEh) // 2 + 1                 # == floor(Hc/2): matches AvgPool2d floor mode
    Wpo = (Wpad - KEw) // 2 + 1
    K = KEh * KEw * Cin
    M = N * Hpo * Wpo

    # Row order on K: (dy, dx, c) with c innermost; column order on M: (N, Hpo, Wpo).
    # Each row is a plain strided slice of NCHW -> no physical transpose emitted by XLA.
    rows = []
    for dy in range(KEh):
        for dx in range(KEw):
            for c in range(Cin):
                rows.append(xp[:, c, dy:dy + 2 * Hpo:2, dx:dx + 2 * Wpo:2].reshape(M))
    patches_km = jnp.stack(rows, axis=0)        # (K, M), bf16

    # Pad M so the grid tiles evenly with a multiple-of-128 tile.
    tile_m_eff = min(tile_m, _round_up(M, 128))
    M_pad = _round_up(M, tile_m_eff)
    if M_pad != M:
        patches_km = jnp.pad(patches_km, ((0, 0), (0, M_pad - M)))

    # Fused weight (Cout, Cin, KEh, KEw) -> (Cout_p, K) matching (dy, dx, c) row order;
    # Cout padded to a sublane multiple (6 -> 8) for unmasked stores.
    Cout_p = _round_up(Cout, 8)
    w_t = jnp.transpose(w_eff, (0, 2, 3, 1)).reshape(Cout, K)
    w_p = jnp.zeros((Cout_p, K), patch_dtype).at[:Cout].set(w_t.astype(patch_dtype))
    b_p = jnp.zeros((Cout_p, 1), jnp.float32).at[:Cout, 0].set(
        bias.reshape(Cout).astype(jnp.float32))

    # ---- Pallas call: 1-D grid over M tiles, weight/bias resident, "parallel" axis ----
    # Per-step VMEM: 2*K*tile*2B (patches) + 2*Cout_p*tile*4B (out) + weight/bias
    #   ~= 200 KiB at tile=512 -> fits every generation's scoped default; no
    #   vmem_limit_bytes override needed.
    grid = (M_pad // tile_m_eff,)
    out_t = pl.pallas_call(
        pic_conv_kernel,
        out_shape=jax.ShapeDtypeStruct((Cout_p, M_pad), jnp.float32),
        grid=grid,
        in_specs=[
            pl.BlockSpec((Cout_p, K), lambda i: (0, 0)),          # weight (resident)
            pl.BlockSpec((K, tile_m_eff), lambda i: (0, i)),      # patches tile
            pl.BlockSpec((Cout_p, 1), lambda i: (0, 0)),          # bias (resident)
        ],
        out_specs=pl.BlockSpec((Cout_p, tile_m_eff), lambda i: (0, i)),
        compiler_params=pltpu.CompilerParams(
            dimension_semantics=("parallel",)),                   # 2 TCs on v7x; free elsewhere
    )(w_p, patches_km, b_p)

    # Slice off Cout / M padding and restore NCHW (output is small; this transpose is
    # kept only to honour the module's NCHW contract).
    out = out_t[:Cout, :M].reshape(Cout, N, Hpo, Wpo)
    return jnp.transpose(out, (1, 0, 2, 3))


def reference(x_nchw, weight, bias):
    """Pure-JAX reference matching the PyTorch forward exactly (f32 throughout)."""
    conv = jax.lax.conv_general_dilated(
        x_nchw, weight, window_strides=(1, 1), padding=((1, 1), (1, 1)),
        dimension_numbers=("NCHW", "OIHW", "NCHW"))
    N, C, H, W = conv.shape
    pooled = conv.reshape(N, C, H // 2, 2, W // 2, 2).mean(axis=(3, 5))
    return jax.nn.sigmoid(pooled + bias.reshape(1, C, 1, 1))


if __name__ == "__main__":
    key = jax.random.PRNGKey(0)
    k_x, k_w, k_b = jax.random.split(key, 3)

    # small shapes consistent with the module: in_channels=4, out_channels=6
    # (the (1,6,1,1) bias forces out_channels==6), kernel=3, stride=1, pad=1
    N, Cin, H, W = 2, 4, 16, 16
    Cout, KH, KW = 6, 3, 3

    x = jax.random.uniform(k_x, (N, Cin, H, W), dtype=jnp.float32)
    weight = jax.random.normal(k_w, (Cout, Cin, KH, KW), dtype=jnp.float32) * 0.1
    bias = jax.random.normal(k_b, (1, Cout, 1, 1), dtype=jnp.float32) * 0.1

    pic_conv = jax.jit(pic_conv_layer)          # fuse the (small) im2col glue
    out = jax.block_until_ready(pic_conv(x, weight, bias))
    ref = jax.block_until_ready(reference(x, weight, bias))

    assert out.shape == (N, Cout, H // 2, W // 2), out.shape
    # bf16 patches/weights with f32 accumulation: loosened tolerance vs the f32 version.
    np.testing.assert_allclose(np.asarray(out), np.asarray(ref), atol=5e-3, rtol=5e-3)

    print("KERNEL_OK")
</pallas_src>

<mosaic_0001>
module attributes {stable_mosaic.version = 11 : i64} {
  func.func @pic_conv_kernel(%arg0: i32, %arg1: memref<8x64xbf16, #tpu.memory_space<vmem>>, %arg2: memref<64x128xbf16, #tpu.memory_space<vmem>>, %arg3: memref<8x1xf32, #tpu.memory_space<vmem>>, %arg4: memref<8x128xf32, #tpu.memory_space<vmem>>) attributes {dimension_semantics = [#tpu.dimension_semantics<parallel>], iteration_bounds = array<i64: 1>, scalar_prefetch = 0 : i64, scratch_operands = 0 : i64, tpu.core_type = #tpu.core_type<tc>, window_params = [{pipeline_mode = #tpu.pipeline_mode<synchronous>, transform_indices = @transform_0, window_bounds = array<i64: 8, 64>}, {transform_indices = @transform_1, window_bounds = array<i64: 64, 128>}, {pipeline_mode = #tpu.pipeline_mode<synchronous>, transform_indices = @transform_2, window_bounds = array<i64: 8, 1>}, {transform_indices = @transform_3, window_bounds = array<i64: 8, 128>}]} {
    %c0 = arith.constant 0 : index
    %c0_0 = arith.constant 0 : index
    %0 = vector.load %arg1[%c0, %c0_0] : memref<8x64xbf16, #tpu.memory_space<vmem>>, vector<8x64xbf16>
    %c0_1 = arith.constant 0 : index
    %c0_2 = arith.constant 0 : index
    %1 = vector.load %arg2[%c0_1, %c0_2] : memref<64x128xbf16, #tpu.memory_space<vmem>>, vector<64x128xbf16>
    %cst = arith.constant dense<0.000000e+00> : vector<8x128xf32>
    %2 = tpu.matmul %0, %1, %cst {dimension_numbers = #tpu.dot_dimension_numbers<[1], [0], [0], [1], [0, 0, 1, 1], [], []>} : vector<8x64xbf16>, vector<64x128xbf16>, vector<8x128xf32> -> vector<8x128xf32>
    %c0_3 = arith.constant 0 : index
    %c0_4 = arith.constant 0 : index
    %3 = vector.load %arg3[%c0_3, %c0_4] : memref<8x1xf32, #tpu.memory_space<vmem>>, vector<8x1xf32>
    %4 = vector.broadcast %3 : vector<8x1xf32> to vector<8x128xf32>
    %5 = arith.addf %2, %4 : vector<8x128xf32>
    %6 = arith.negf %5 : vector<8x128xf32>
    %7 = math.exp %6 : vector<8x128xf32>
    %cst_5 = arith.constant 1.000000e+00 : f32
    %8 = vector.broadcast %cst_5 : f32 to vector<8x128xf32>
    %9 = arith.addf %8, %7 : vector<8x128xf32>
    %10 = arith.divf %8, %9 : vector<8x128xf32>
    %c0_6 = arith.constant 0 : index
    %c0_7 = arith.constant 0 : index
    %11 = vector.load %arg4[%c0_6, %c0_7] : memref<8x128xf32, #tpu.memory_space<vmem>>, vector<8x128xf32>
    tpu.vector_store %arg4[%c0_6, %c0_7], %10 {strides = array<i32>} : memref<8x128xf32, #tpu.memory_space<vmem>>, vector<8x128xf32>,
    return
  }
  func.func @transform_0(%arg0: i32) -> (i32, i32) {
    %c0_i32 = arith.constant 0 : i32
    %c0_i32_0 = arith.constant 0 : i32
    %c0_i32_1 = arith.constant 0 : i32
    return %c0_i32, %c0_i32_0 : i32, i32
  }
  func.func @transform_1(%arg0: i32) -> (i32, i32) {
    %c0_i32 = arith.constant 0 : i32
    %c0_i32_0 = arith.constant 0 : i32
    return %c0_i32, %arg0 : i32, i32
  }
  func.func @transform_2(%arg0: i32) -> (i32, i32) {
    %c0_i32 = arith.constant 0 : i32
    %c0_i32_0 = arith.constant 0 : i32
    %c0_i32_1 = arith.constant 0 : i32
    return %c0_i32, %c0_i32_0 : i32, i32
  }
  func.func @transform_3(%arg0: i32) -> (i32, i32) {
    %c0_i32 = arith.constant 0 : i32
    %c0_i32_0 = arith.constant 0 : i32
    return %c0_i32, %arg0 : i32, i32
  }
}

</mosaic_0001>

<llo_original>
// kernel: squeeze.127
$region0: #{squeeze.127}
  %s0 = inlined_call_operand.vmem [shape: bf16[2,1,8,8], index: 0, kind: input, shape index: {}]
  %s1 = inlined_call_operand.vmem [shape: bf16[1,128], index: 1, kind: output, shape index: {}]
  $region1: #{squeeze.127} parent=0
    #allocation0 [shape = 'u8[4096]{0}', space=vmem, size = 0x1000, scoped, tag = 'scoped mem for output reshape']
    #allocation1 [shape = 'u8[8192]{0}', space=vmem, size = 0x2000, scoped, tag = 'scoped mem for input reshape']
    %s3 = smul.u32 4, 2
    %s4 = sshll.u32 1, %s3
    %s5 = ssub.s32 %s4, 1
    %s6 = scalar_lea.vmem %s0, 4
    %s7 = sshrl.u32 %s5, 1
    %s8 = sor.u32 %s5, %s7
    %s9 = sand.u32 %s8, 85
    %s10 = sshrl.u32 %s9, 1
    %s11 = sor.u32 %s9, %s10
    %s12 = sand.u32 51, %s11
    %s13 = sshrl.u32 %s12, 2
    %s14 = sor.u32 %s12, %s13
    %s15 = sand.u32 15, %s14
    %v16 = vld [vmem:[%s6] sm:%s15]
    %v17 = vunpack.c.l.bf16 %v16
    %v18 = vunpack.c.h.bf16 %v16
    %s19 = scalar_lea.vmem [#allocation1], 8
    %20 = vst [vmem:[%s19] sm:%s5] %v17
    %s21 = sshrl.u32 %s5, 1
    %s22 = sor.u32 %s5, %s21
    %s23 = sand.u32 %s22, 85
    %s24 = sshrl.u32 %s23, 1
    %s25 = sor.u32 %s23, %s24
    %s26 = sand.u32 51, %s25
    %s27 = sshrl.u32 %s26, 2
    %s28 = sor.u32 %s26, %s27
    %s29 = sand.u32 15, %s28
    %v30 = vld [vmem:[%s0] sm:%s29]
    %v31 = vunpack.c.l.bf16 %v30
    %v32 = vunpack.c.h.bf16 %v30
    %33 = vst [vmem:[#allocation1] sm:%s5] %v31
    %v34 = vld [vmem:[#allocation1] sm:$0x1]
    %vm35 = vcmask 64512
    %36 = vst.msk [vmem:[#allocation0] sm:$0x1] %vm35, %v34
    %s37 = scalar_lea.vmem [#allocation1], 15
    %v38 = vld [vmem:[%s37] sm:$0x1]
    %39 = vrot.lane.b32.xlu0 %v38, 120
    %v40 = vpop.permute.xlu0 %39
    %vm41 = vcmask 1048512
    %42 = vst.msk [vmem:[#allocation0] sm:$0x1] %vm41, %v40
    %s43 = scalar_lea.vmem [#allocation1], 14
    %v44 = vld [vmem:[%s43] sm:$0x1]
    %45 = vrot.lane.b32.xlu0 %v44, 112
    %v46 = vpop.permute.xlu0 %45
    %vm47 = vcmask 982912
    %48 = vst.msk [vmem:[#allocation0] sm:$0x1] %vm47, %v46
    %s49 = scalar_lea.vmem [#allocation1], 13
    %v50 = vld [vmem:[%s49] sm:$0x1]
    %51 = vrot.lane.b32.xlu0 %v50, 104
    %v52 = vpop.permute.xlu0 %51
    %vm53 = vcmask 917312
    %54 = vst.msk [vmem:[#allocation0] sm:$0x1] %vm53, %v52
    %s55 = scalar_lea.vmem [#allocation1], 12
    %v56 = vld [vmem:[%s55] sm:$0x1]
    %57 = vrot.lane.b32.xlu0 %v56, 96
    %v58 = vpop.permute.xlu0 %57
    %vm59 = vcmask 851712
    %60 = vst.msk [vmem:[#allocation0] sm:$0x1] %vm59, %v58
    %s61 = scalar_lea.vmem [#allocation1], 11
    %v62 = vld [vmem:[%s61] sm:$0x1]
    %63 = vrot.lane.b32.xlu0 %v62, 88
    %v64 = vpop.permute.xlu0 %63
    %vm65 = vcmask 786112
    %66 = vst.msk [vmem:[#allocation0] sm:$0x1] %vm65, %v64
    %s67 = scalar_lea.vmem [#allocation1], 10
    %v68 = vld [vmem:[%s67] sm:$0x1]
    %69 = vrot.lane.b32.xlu0 %v68, 80
    %v70 = vpop.permute.xlu0 %69
    %vm71 = vcmask 720512
    %72 = vst.msk [vmem:[#allocation0] sm:$0x1] %vm71, %v70
    %s73 = scalar_lea.vmem [#allocation1], 9
    %v74 = vld [vmem:[%s73] sm:$0x1]
    %75 = vrot.lane.b32.xlu0 %v74, 72
    %v76 = vpop.permute.xlu0 %75
    %vm77 = vcmask 654912
    %78 = vst.msk [vmem:[#allocation0] sm:$0x1] %vm77, %v76
    %s79 = scalar_lea.vmem [#allocation1], 8
    %v80 = vld [vmem:[%s79] sm:$0x1]
    %81 = vrot.lane.b32.xlu0 %v80, 64
    %v82 = vpop.permute.xlu0 %81
    %vm83 = vcmask 589312
    %84 = vst.msk [vmem:[#allocation0] sm:$0x1] %vm83, %v82
    %s85 = scalar_lea.vmem [#allocation1], 7
    %v86 = vld [vmem:[%s85] sm:$0x1]
    %87 = vrot.lane.b32.xlu0 %v86, 56
    %v88 = vpop.permute.xlu0 %87
    %vm89 = vcmask 523712
    %90 = vst.msk [vmem:[#allocation0] sm:$0x1] %vm89, %v88
    %s91 = scalar_lea.vmem [#allocation1], 6
    %v92 = vld [vmem:[%s91] sm:$0x1]
    %93 = vrot.lane.b32.xlu0 %v92, 48
    %v94 = vpop.permute.xlu0 %93
    %vm95 = vcmask 458112
    %96 = vst.msk [vmem:[#allocation0] sm:$0x1] %vm95, %v94
    %s97 = scalar_lea.vmem [#allocation1], 5
    %v98 = vld [vmem:[%s97] sm:$0x1]
    %99 = vrot.lane.b32.xlu0 %v98, 40
    %v100 = vpop.permute.xlu0 %99
    %vm101 = vcmask 392512
    %102 = vst.msk [vmem:[#allocation0] sm:$0x1] %vm101, %v100
    %s103 = scalar_lea.vmem [#allocation1], 4
    %v104 = vld [vmem:[%s103] sm:$0x1]
    %105 = vrot.lane.b32.xlu0 %v104, 32
    %v106 = vpop.permute.xlu0 %105
    %vm107 = vcmask 326912
    %108 = vst.msk [vmem:[#allocation0] sm:$0x1] %vm107, %v106
    %s109 = scalar_lea.vmem [#allocation1], 3
    %v110 = vld [vmem:[%s109] sm:$0x1]
    %111 = vrot.lane.b32.xlu0 %v110, 24
    %v112 = vpop.permute.xlu0 %111
    %vm113 = vcmask 261312
    %114 = vst.msk [vmem:[#allocation0] sm:$0x1] %vm113, %v112
    %s115 = scalar_lea.vmem [#allocation1], 2
    %v116 = vld [vmem:[%s115] sm:$0x1]
    %117 = vrot.lane.b32.xlu0 %v116, 16
    %v118 = vpop.permute.xlu0 %117
    %vm119 = vcmask 195712
    %120 = vst.msk [vmem:[#allocation0] sm:$0x1] %vm119, %v118
    %s121 = scalar_lea.vmem [#allocation1], 1
    %v122 = vld [vmem:[%s121] sm:$0x1]
    %123 = vrot.lane.b32.xlu0 %v122, 8
    %v124 = vpop.permute.xlu0 %123
    %vm125 = vcmask 130112
    %126 = vst.msk [vmem:[#allocation0] sm:$0x1] %vm125, %v124
    %s128 = smul.u32 1, 2
    %s129 = sshll.u32 1, %s128
    %s130 = ssub.s32 %s129, 1
    %s131 = sshrl.u32 %s128, 1
    %v132 = vld [vmem:[#allocation0] sm:%s130]
    %v133 = vpack.c.bf16 0.0, %v132
    %s134 = sshll.u32 1, %s131
    %s135 = ssub.s32 %s134, 1
    %136 = vst [vmem:[%s1] sm:%s135] %v133

// kernel: pic_conv_layer.1
$region0: #{pic_conv_layer.1}
  #allocation0 [shape = 'u32[]', space=smem, size = 0x4, offset = 0x4, fixed_abs, tag = 'smem constant byte address 0x4 - core index']
  #allocation1 [shape = 'u32[144,128]{1,0:T(1,128)}', space=vmem, size = 0x12000, scoped, tag = 'internal scratch']
  %s0 = inlined_call_operand.vmem [shape: bf16[8,64], index: 0, kind: input, shape index: {}]
  %s1 = inlined_call_operand.vmem [shape: bf16[64,128], index: 1, kind: input, shape index: {}]
  %s2 = inlined_call_operand.vmem [shape: f32[8,1], index: 2, kind: input, shape index: {}]
  %s3 = inlined_call_operand.vmem [shape: f32[8,128], index: 3, kind: output, shape index: {}]
  %s4 = sld [smem:[#allocation0]]
  $region22: #{pic_conv_layer.1} parent=0
    _
  %s6 = ssub.s32 1, %s4
  %s7 = scalar_select 0, %s6, %s4
  // Predicated region
  $region2: #{pic_conv_layer.1} parent=0 // pred_check
    _
  $region3: #{pic_conv_layer.1} parent=0 // pred_check_branch
    %9 = sbr.rel (0) target = $region5
  $region4: #{pic_conv_layer.1} parent=0 // pred_region
    _
  $region5: #{pic_conv_layer.1} parent=0 // pred_fallthru
    _
  // Predicated region
  $region6: #{pic_conv_layer.1} parent=0 // pred_check
    _
  $region7: #{pic_conv_layer.1} parent=0 // pred_check_branch
    %11 = sbr.rel (0) target = $region9
  $region8: #{pic_conv_layer.1} parent=0 // pred_region
    _
  $region9: #{pic_conv_layer.1} parent=0 // pred_fallthru
    _
  // Predicated region
  $region10: #{pic_conv_layer.1} parent=0 // pred_check
    _
  $region11: #{pic_conv_layer.1} parent=0 // pred_check_branch
    %13 = sbr.rel (0) target = $region13
  $region12: #{pic_conv_layer.1} parent=0 // pred_region
    _
  $region13: #{pic_conv_layer.1} parent=0 // pred_fallthru
    _
  %v15 = vld [vmem:[%s0] sm:$0xf]
  %v16 = vld [vmem:[%s1] sm:$0xf]
  %v17 = vld [vmem:[%s1 + $0x4] sm:$0xf]
  %v18 = vld [vmem:[%s1 + $0x8] sm:$0xf]
  %v19 = vld [vmem:[%s1 + $0xc] sm:$0xf]
  %v20 = vld [vmem:[%s1 + $0x10] sm:$0xf]
  %v21 = vld [vmem:[%s1 + $0x14] sm:$0xf]
  %v22 = vld [vmem:[%s1 + $0x18] sm:$0xf]
  %v23 = vld [vmem:[%s1 + $0x1c] sm:$0xf]
  %v24 = vld [vmem:[%s2] sm:$0xff]
  %26 = vset.pattern.permute.xlu0 0
  %27 = vperm.xlu0 %26, %v24
  %v28 = vpop.permute.xlu0 %27
  %v38 = vunpack.c.l.b16 %v16
  %v39 = vunpack.c.l.b16 %v17
  %v40 = vunpack.c.l.b16 %v18
  %v41 = vunpack.c.l.b16 %v19
  %v42 = vunpack.c.l.b16 %v20
  %v43 = vunpack.c.l.b16 %v21
  %v44 = vunpack.c.l.b16 %v22
  %v45 = vunpack.c.l.b16 %v23
  %v46 = vpack.c.b16 %v39, %v38
  %v47 = vpack.c.b16 %v41, %v40
  %v48 = vpack.c.b16 %v43, %v42
  %v49 = vpack.c.b16 %v45, %v44
  %vm54 = vcmask 523264
  %v56 = vsel %vm54, %v15, 0
  %58 = vmatprep.subr.bf16.mxu0 0
  %59 = vmatpush1.bf16.msra.mxu0 0
  %60 = vmatprep.subr.bf16.mxu0 0
  %61 = vmatpush1.bf16.msra.mxu0 0
  %62 = vmatprep.subr.bf16.mxu0 0
  %63 = vmatpush1.bf16.msra.mxu0 0
  %64 = vmatprep.subr.bf16.mxu0 0
  %65 = vmatpush1.bf16.msra.mxu0 0
  %66 = vmatprep.subr.bf16.mxu0 0
  %67 = vmatpush1.bf16.msra.mxu0 %v49
  %68 = vmatprep.subr.bf16.mxu0 0
  %69 = vmatpush1.bf16.msra.mxu0 %v48
  %70 = vmatprep.subr.bf16.mxu0 0
  %71 = vmatpush1.bf16.msra.mxu0 %v47
  %72 = vmatprep.subr.bf16.mxu0 0
  %73 = vmatpush1.bf16.msra.mxu0 %v46
  %74 = vmatprep.subr.bf16.mxu0 0
  %75 = vmatpush2.bf16.msra.mxu0 0
  %76 = vmatprep.subr.bf16.mxu0 0
  %77 = vmatpush2.bf16.msra.mxu0 0
  %78 = vmatprep.subr.bf16.mxu0 0
  %79 = vmatpush2.bf16.msra.mxu0 0
  %80 = vmatprep.subr.bf16.mxu0 0
  %81 = vmatpush2.bf16.msra.mxu0 0
  %82 = vmatprep.subr.bf16.mxu0 0
  %83 = vmatpush2.bf16.msra.mxu0 0
  %84 = vmatprep.subr.bf16.mxu0 0
  %85 = vmatpush2.bf16.msra.mxu0 0
  %86 = vmatprep.subr.bf16.mxu0 0
  %87 = vmatpush2.bf16.msra.mxu0 0
  %88 = vmatprep.subr.bf16.mxu0 0
  %89 = vmatpush2.bf16.msra.mxu0 0
  %90 = vmatprep.mubr.bf16.mxu0 0
  %91 = vmatmul.mubr.bf16.gmra.mxu0 %v56
  %v92 = vpop.f32.mrf.mxu0
  %v93 = vadd.f32 %v28, %v92
  %v94 = vpop.f32.mrf.mxu0
  %v95 = vpop.f32.mrf.mxu0
  %v96 = vpop.f32.mrf.mxu0
  %97 = vdwg.mxu0
  %v98 = vxor.u32 %v93, 2147483648
  %v99 = vmul.f32 %v98, 1.442695
  %v100 = vpow.pop %v99
  %v101 = vadd.f32 %v100, 1.0
  %v102 = vrcp.pop %v101
  %v103 = vmul.f32 1.0, %v102
  %104 = vst [vmem:[%s3] sm:$0xff] %v103
  // Predicated region
  $region14: #{pic_conv_layer.1} parent=0 // pred_check
    _
  $region15: #{pic_conv_layer.1} parent=0 // pred_check_branch
    %106 = sbr.rel (0) target = $region17
  $region16: #{pic_conv_layer.1} parent=0 // pred_region
    _
  $region17: #{pic_conv_layer.1} parent=0 // pred_fallthru
    _
  // Predicated region
  $region18: #{pic_conv_layer.1} parent=0 // pred_check
    _
  $region19: #{pic_conv_layer.1} parent=0 // pred_check_branch
    %108 = sbr.rel (0) target = $region21
  $region20: #{pic_conv_layer.1} parent=0 // pred_region
    _
  $region21: #{pic_conv_layer.1} parent=0 // pred_fallthru
    _

</llo_original>
